<compile_context>
chip_gen: v5e
topology: v5e:2x2
jax: 0.10.0
libtpu: 0.0.40
codegen_flags: <defaults>
</compile_context>

<pallas_src>
import jax
import jax.numpy as jnp
import numpy as np
from jax.experimental import pallas as pl
from jax.experimental.pallas import tpu as pltpu


_PAD = 8  # sublane-aligned offset of the image rows inside the halo scratch


def _conv_bn_relu(x, xp_ref, t_ref, s_ref, b_ref):
    """3x3 conv (pad=1, stride=1) + folded BN + ReLU on batched row slabs.

    x:      (B, H, W*Cin)  f32 layer input; lane index = w*Cin + ci
    xp_ref: (B, _PAD+H+1, W*Cin) f32 VMEM scratch; rows [_PAD, _PAD+H) hold the image,
            rows _PAD-1 and _PAD+H are the (zeroed) top/bottom halo rows.
    t_ref:  (3, W*Cin, W*Cout) bf16 row-Toeplitz banks; bank kh is applied to input
            row h + kh - 1 (0 = row above, 1 = same row, 2 = row below).
    s_ref:  (1, W*Cout) f32 folded BN scale, tiled per output pixel
    b_ref:  (1, W*Cout) f32 folded BN bias,  tiled per output pixel
    returns (B, H, W*Cout) f32
    """
    B, H, WC = x.shape
    WCo = t_ref.shape[-1]

    # Zero ONLY the two halo rows that are read below. Done every grid step (cheap:
    # 2*B rows) so the scratch is valid on every core under megacore grid sharding.
    zero_row = jnp.zeros((B, 1, WC), jnp.float32)
    xp_ref[:, _PAD - 1:_PAD, :] = zero_row
    xp_ref[:, _PAD + H:_PAD + H + 1, :] = zero_row

    # Sublane-aligned store of the image rows into the halo scratch.
    xp_ref[:, _PAD:_PAD + H, :] = x

    # Shifted row views straight from the Ref (only the rows needed are loaded).
    x_top = xp_ref[:, _PAD - 1:_PAD - 1 + H, :].reshape(B * H, WC)  # rows h-1 (zero @ h=0)
    x_bot = xp_ref[:, _PAD + 1:_PAD + 1 + H, :].reshape(B * H, WC)  # rows h+1 (zero @ h=H-1)
    x_mid = x.reshape(B * H, WC)                                    # rows h

    # Three accumulating MXU matmuls (bf16 operands, f32 accumulation). M = B*H.
    y = jnp.dot(x_mid.astype(jnp.bfloat16), t_ref[1],
                preferred_element_type=jnp.float32)
    y += jnp.dot(x_top.astype(jnp.bfloat16), t_ref[0],
                 preferred_element_type=jnp.float32)
    y += jnp.dot(x_bot.astype(jnp.bfloat16), t_ref[2],
                 preferred_element_type=jnp.float32)

    y = y * s_ref[...] + b_ref[...]        # fused BatchNorm (eval), f32
    y = jnp.maximum(y, 0.0)                # ReLU
    return y.reshape(B, H, WCo)


def _unet_conv_kernel(x_ref, t1_ref, s1_ref, b1_ref, t2_ref, s2_ref, b2_ref,
                      o_ref, xp1_ref, xp2_ref):
    """B images per grid step; both conv layers fused (intermediate stays in VMEM)."""
    x = x_ref[...].astype(jnp.float32)                            # (B, H, W*Cin)
    y1 = _conv_bn_relu(x, xp1_ref, t1_ref, s1_ref, b1_ref)        # (B, H, W*Cout)
    y2 = _conv_bn_relu(y1, xp2_ref, t2_ref, s2_ref, b2_ref)       # (B, H, W*Cout)
    o_ref[...] = y2.astype(o_ref.dtype)                           # lane-dense store


def _row_toeplitz_banks(w_hwio, W):
    """Scatter (3,3,Cin,Cout) HWIO weights into (3, W*Cin, W*Cout) bf16 kh banks.

    Bank kh, row index = wi*Cin + ci (input pixel wi, channel ci),
    col index = w*Cout + co (output pixel w, channel co), wi = w + kw - 1.
    Zero padding along W is implicit: out-of-range taps have no entry.
    """
    w_np = np.asarray(w_hwio, np.float32)
    ks, _, cin, cout = w_np.shape
    t = np.zeros((ks, W * cin, W * cout), np.float32)
    for kh in range(ks):
        for kw in range(ks):
            for w in range(W):
                wi = w + kw - 1
                if 0 <= wi < W:
                    t[kh, wi * cin:(wi + 1) * cin, w * cout:(w + 1) * cout] = w_np[kh, kw]
    return jnp.asarray(t, dtype=jnp.bfloat16)


def _tile_channel(v, W):
    """(Cout,) per-channel vector -> (1, W*Cout), element at w*Cout+co == v[co]."""
    return jnp.tile(v.astype(jnp.float32).reshape(1, -1), (1, W))


def _pick_batch_block(N, H, W, Cin, Cout, target_rows=512, vmem_budget=24 << 20):
    """Largest divisor B of N whose footprint fits a conservative VMEM budget, stopping
    once B*H reaches ~target_rows (fills the MXU M dimension on v6e/v7x)."""
    best = 1
    for b in range(1, N + 1):
        if N % b:
            continue
        need = (2 * b * H * W * (Cin + Cout) * 4              # in/out blocks (x2 buffers)
                + b * (_PAD + H + 1) * W * (Cin + Cout) * 4   # halo scratches
                + b * H * W * (3 * Cin + 5 * Cout) * 4)       # live operands/accumulators
        if b > 1 and need > vmem_budget:
            break
        best = b
        if b * H >= target_rows:
            break
    return best


def _vmem_limit_bytes(B, H, W, Cin, Cout):
    """Explicit scoped-VMEM limit: blocks + weights + scratch + live values, 2x slack."""
    in_out = 2 * B * H * W * (Cin + Cout) * 4                       # double-buffered blocks
    weights = 2 * 2 * 3 * W * W * Cout * (Cin + Cout)               # bf16 banks, x2 buffers
    scale_bias = 2 * 4 * W * Cout * 4
    scratch = B * (_PAD + H + 1) * W * (Cin + Cout) * 4
    live = B * H * W * (3 * Cin + 5 * Cout) * 4
    need = in_out + weights + scale_bias + scratch + live
    return int(min(max(2 * need, 16 << 20), 64 << 20))


def unet_conv_forward(x_nchw, params, *, batch_block=None):
    """Forward of UnetConv. Input NCHW (PyTorch convention), output NCHW."""
    N, Cin, H, W = x_nchw.shape
    (w1, s1, b1), (w2, s2, b2) = params
    Cout = w1.shape[-1]

    B = batch_block if batch_block is not None else _pick_batch_block(N, H, W, Cin, Cout)
    assert N % B == 0, "batch_block must divide N"

    # NCHW -> row-slab layout (N, H, W*Cin): one transpose, the reshape is free.
    x_rows = jnp.transpose(x_nchw, (0, 2, 3, 1)).reshape(N, H, W * Cin)

    t1 = _row_toeplitz_banks(w1, W)               # (3, W*Cin,  W*Cout) bf16
    t2 = _row_toeplitz_banks(w2, W)               # (3, W*Cout, W*Cout) bf16
    s1t, b1t = _tile_channel(s1, W), _tile_channel(b1, W)
    s2t, b2t = _tile_channel(s2, W), _tile_channel(b2, W)

    HP = _PAD + H + 1                             # halo scratch rows per image

    out_rows = pl.pallas_call(
        _unet_conv_kernel,
        out_shape=jax.ShapeDtypeStruct((N, H, W * Cout), x_nchw.dtype),
        grid_spec=pltpu.PrefetchScalarGridSpec(
            num_scalar_prefetch=0,
            grid=(N // B,),
            in_specs=[
                pl.BlockSpec((B, H, W * Cin), lambda n: (n, 0, 0)),
                pl.BlockSpec(t1.shape, lambda n: (0, 0, 0)),
                pl.BlockSpec((1, W * Cout), lambda n: (0, 0)),
                pl.BlockSpec((1, W * Cout), lambda n: (0, 0)),
                pl.BlockSpec(t2.shape, lambda n: (0, 0, 0)),
                pl.BlockSpec((1, W * Cout), lambda n: (0, 0)),
                pl.BlockSpec((1, W * Cout), lambda n: (0, 0)),
            ],
            out_specs=pl.BlockSpec((B, H, W * Cout), lambda n: (n, 0, 0)),
            scratch_shapes=[
                pltpu.VMEM((B, HP, W * Cin), jnp.float32),    # layer-1 halo rows
                pltpu.VMEM((B, HP, W * Cout), jnp.float32),   # layer-2 halo rows
            ],
        ),
        compiler_params=pltpu.CompilerParams(
            dimension_semantics=("parallel",),
            vmem_limit_bytes=_vmem_limit_bytes(B, H, W, Cin, Cout)),
    )(x_rows, t1, s1t, b1t, t2, s2t, b2t)

    # (N, H, W*Cout) -> (N, Cout, H, W)
    return jnp.transpose(out_rows.reshape(N, H, W, Cout), (0, 3, 1, 2))


def make_unet_conv_params(key, in_size, out_size, is_batchnorm=True, eps=1e-5):
    """Deterministic synthetic parameters for the two conv(+BN) layers (HWIO weights)."""
    ks = 3
    keys = jax.random.split(key, 8)
    params = []
    cin = in_size
    for layer in range(2):
        k_w, k_b, k_g, k_beta = keys[4 * layer: 4 * layer + 4]
        fan_in = cin * ks * ks
        bound = 1.0 / np.sqrt(fan_in)
        w = jax.random.uniform(k_w, (ks, ks, cin, out_size),
                               minval=-bound, maxval=bound, dtype=jnp.float32)
        b = jax.random.uniform(k_b, (out_size,),
                               minval=-bound, maxval=bound, dtype=jnp.float32)
        if is_batchnorm:
            gamma = 1.0 + 0.1 * jax.random.normal(k_g, (out_size,), jnp.float32)
            beta = 0.1 * jax.random.normal(k_beta, (out_size,), jnp.float32)
            run_mean = jnp.zeros((out_size,), jnp.float32)
            run_var = jnp.ones((out_size,), jnp.float32)
            scale = gamma / jnp.sqrt(run_var + eps)
            bias = (b - run_mean) * scale + beta
        else:
            scale = jnp.ones((out_size,), jnp.float32)
            bias = b
        params.append((w, scale, bias))
        cin = out_size
    return params


def _reference_forward(x_nchw, params):
    """Pure-JAX reference (lax conv) for a correctness check."""
    x = x_nchw
    for (w_hwio, scale, bias) in params:
        y = jax.lax.conv_general_dilated(
            x, w_hwio, window_strides=(1, 1), padding=((1, 1), (1, 1)),
            dimension_numbers=("NCHW", "HWIO", "NCHW"))
        y = y * scale[None, :, None, None] + bias[None, :, None, None]
        x = jnp.maximum(y, 0.0)
    return x


if __name__ == "__main__":
    key = jax.random.PRNGKey(0)
    k_x, k_p = jax.random.split(key)

    N, Cin, H, W = 2, 4, 16, 16
    Cout = 8  # W * Cout = 128 -> lane-dense output slab

    x = jax.random.normal(k_x, (N, Cin, H, W), dtype=jnp.float32)
    params = make_unet_conv_params(k_p, Cin, Cout, is_batchnorm=True)

    out = unet_conv_forward(x, params)
    out = jax.block_until_ready(out)

    ref = _reference_forward(x, params)
    # bf16 matmul operands -> loosened tolerance (f32 accumulation keeps it ~1e-2 rel).
    np.testing.assert_allclose(np.asarray(out), np.asarray(ref), rtol=2e-2, atol=2e-2)

    assert out.shape == (N, Cout, H, W)
    print("KERNEL_OK")
</pallas_src>

<mosaic_0001>
module attributes {stable_mosaic.version = 11 : i64} {
  func.func @_unet_conv_kernel(%arg0: i32, %arg1: memref<2x16x64xf32, #tpu.memory_space<vmem>>, %arg2: memref<3x64x128xbf16, #tpu.memory_space<vmem>>, %arg3: memref<1x128xf32, #tpu.memory_space<vmem>>, %arg4: memref<1x128xf32, #tpu.memory_space<vmem>>, %arg5: memref<3x128x128xbf16, #tpu.memory_space<vmem>>, %arg6: memref<1x128xf32, #tpu.memory_space<vmem>>, %arg7: memref<1x128xf32, #tpu.memory_space<vmem>>, %arg8: memref<2x16x128xf32, #tpu.memory_space<vmem>>, %arg9: memref<2x25x64xf32, #tpu.memory_space<vmem>>, %arg10: memref<2x25x128xf32, #tpu.memory_space<vmem>>) attributes {dimension_semantics = [#tpu.dimension_semantics<parallel>], iteration_bounds = array<i64: 1>, scalar_prefetch = 0 : i64, scratch_operands = 2 : i64, tpu.core_type = #tpu.core_type<tc>, window_params = [{transform_indices = @transform_0, window_bounds = array<i64: 2, 16, 64>}, {pipeline_mode = #tpu.pipeline_mode<synchronous>, transform_indices = @transform_1, window_bounds = array<i64: 3, 64, 128>}, {pipeline_mode = #tpu.pipeline_mode<synchronous>, transform_indices = @transform_2, window_bounds = array<i64: 1, 128>}, {pipeline_mode = #tpu.pipeline_mode<synchronous>, transform_indices = @transform_3, window_bounds = array<i64: 1, 128>}, {pipeline_mode = #tpu.pipeline_mode<synchronous>, transform_indices = @transform_4, window_bounds = array<i64: 3, 128, 128>}, {pipeline_mode = #tpu.pipeline_mode<synchronous>, transform_indices = @transform_5, window_bounds = array<i64: 1, 128>}, {pipeline_mode = #tpu.pipeline_mode<synchronous>, transform_indices = @transform_6, window_bounds = array<i64: 1, 128>}, {transform_indices = @transform_7, window_bounds = array<i64: 2, 16, 128>}]} {
    %c0 = arith.constant 0 : index
    %c0_0 = arith.constant 0 : index
    %c0_1 = arith.constant 0 : index
    %0 = vector.load %arg1[%c0, %c0_0, %c0_1] : memref<2x16x64xf32, #tpu.memory_space<vmem>>, vector<2x16x64xf32>
    %cst = arith.constant 0.000000e+00 : f32
    %1 = vector.broadcast %cst : f32 to vector<2x1x64xf32>
    %c0_2 = arith.constant 0 : index
    %c7 = arith.constant 7 : index
    %c0_3 = arith.constant 0 : index
    %2 = vector.load %arg9[%c0_2, %c7, %c0_3] : memref<2x25x64xf32, #tpu.memory_space<vmem>>, vector<2x1x64xf32>
    tpu.vector_store %arg9[%c0_2, %c7, %c0_3], %1 {strides = array<i32>} : memref<2x25x64xf32, #tpu.memory_space<vmem>>, vector<2x1x64xf32>,
    %c0_4 = arith.constant 0 : index
    %c24 = arith.constant 24 : index
    %c0_5 = arith.constant 0 : index
    %3 = vector.load %arg9[%c0_4, %c24, %c0_5] : memref<2x25x64xf32, #tpu.memory_space<vmem>>, vector<2x1x64xf32>
    tpu.vector_store %arg9[%c0_4, %c24, %c0_5], %1 {strides = array<i32>} : memref<2x25x64xf32, #tpu.memory_space<vmem>>, vector<2x1x64xf32>,
    %c0_6 = arith.constant 0 : index
    %c8 = arith.constant 8 : index
    %c0_7 = arith.constant 0 : index
    %4 = vector.load %arg9[%c0_6, %c8, %c0_7] : memref<2x25x64xf32, #tpu.memory_space<vmem>>, vector<2x16x64xf32>
    tpu.vector_store %arg9[%c0_6, %c8, %c0_7], %0 {strides = array<i32>} : memref<2x25x64xf32, #tpu.memory_space<vmem>>, vector<2x16x64xf32>,
    %c0_8 = arith.constant 0 : index
    %c7_9 = arith.constant 7 : index
    %c0_10 = arith.constant 0 : index
    %5 = vector.load %arg9[%c0_8, %c7_9, %c0_10] : memref<2x25x64xf32, #tpu.memory_space<vmem>>, vector<2x16x64xf32>
    %6 = vector.shape_cast %5 : vector<2x16x64xf32> to vector<32x64xf32>
    %c0_11 = arith.constant 0 : index
    %c9 = arith.constant 9 : index
    %c0_12 = arith.constant 0 : index
    %7 = vector.load %arg9[%c0_11, %c9, %c0_12] : memref<2x25x64xf32, #tpu.memory_space<vmem>>, vector<2x16x64xf32>
    %8 = vector.shape_cast %7 : vector<2x16x64xf32> to vector<32x64xf32>
    %9 = vector.shape_cast %0 : vector<2x16x64xf32> to vector<32x64xf32>
    %10 = arith.truncf %9 : vector<32x64xf32> to vector<32x64xbf16>
    %c1 = arith.constant 1 : index
    %c0_13 = arith.constant 0 : index
    %c0_14 = arith.constant 0 : index
    %11 = vector.load %arg2[%c1, %c0_13, %c0_14] : memref<3x64x128xbf16, #tpu.memory_space<vmem>>, vector<1x64x128xbf16>
    %12 = vector.shape_cast %11 : vector<1x64x128xbf16> to vector<64x128xbf16>
    %cst_15 = arith.constant dense<0.000000e+00> : vector<32x128xf32>
    %13 = tpu.matmul %10, %12, %cst_15 {dimension_numbers = #tpu.dot_dimension_numbers<[1], [0], [0], [1], [0, 0, 1, 1], [], []>} : vector<32x64xbf16>, vector<64x128xbf16>, vector<32x128xf32> -> vector<32x128xf32>
    %14 = arith.truncf %6 : vector<32x64xf32> to vector<32x64xbf16>
    %c0_16 = arith.constant 0 : index
    %c0_17 = arith.constant 0 : index
    %c0_18 = arith.constant 0 : index
    %15 = vector.load %arg2[%c0_16, %c0_17, %c0_18] : memref<3x64x128xbf16, #tpu.memory_space<vmem>>, vector<1x64x128xbf16>
    %16 = vector.shape_cast %15 : vector<1x64x128xbf16> to vector<64x128xbf16>
    %cst_19 = arith.constant dense<0.000000e+00> : vector<32x128xf32>
    %17 = tpu.matmul %14, %16, %cst_19 {dimension_numbers = #tpu.dot_dimension_numbers<[1], [0], [0], [1], [0, 0, 1, 1], [], []>} : vector<32x64xbf16>, vector<64x128xbf16>, vector<32x128xf32> -> vector<32x128xf32>
    %18 = arith.addf %13, %17 : vector<32x128xf32>
    %19 = arith.truncf %8 : vector<32x64xf32> to vector<32x64xbf16>
    %c2 = arith.constant 2 : index
    %c0_20 = arith.constant 0 : index
    %c0_21 = arith.constant 0 : index
    %20 = vector.load %arg2[%c2, %c0_20, %c0_21] : memref<3x64x128xbf16, #tpu.memory_space<vmem>>, vector<1x64x128xbf16>
    %21 = vector.shape_cast %20 : vector<1x64x128xbf16> to vector<64x128xbf16>
    %cst_22 = arith.constant dense<0.000000e+00> : vector<32x128xf32>
    %22 = tpu.matmul %19, %21, %cst_22 {dimension_numbers = #tpu.dot_dimension_numbers<[1], [0], [0], [1], [0, 0, 1, 1], [], []>} : vector<32x64xbf16>, vector<64x128xbf16>, vector<32x128xf32> -> vector<32x128xf32>
    %23 = arith.addf %18, %22 : vector<32x128xf32>
    %c0_23 = arith.constant 0 : index
    %c0_24 = arith.constant 0 : index
    %24 = vector.load %arg3[%c0_23, %c0_24] : memref<1x128xf32, #tpu.memory_space<vmem>>, vector<1x128xf32>
    %25 = vector.broadcast %24 : vector<1x128xf32> to vector<32x128xf32>
    %26 = arith.mulf %23, %25 : vector<32x128xf32>
    %c0_25 = arith.constant 0 : index
    %c0_26 = arith.constant 0 : index
    %27 = vector.load %arg4[%c0_25, %c0_26] : memref<1x128xf32, #tpu.memory_space<vmem>>, vector<1x128xf32>
    %28 = vector.broadcast %27 : vector<1x128xf32> to vector<32x128xf32>
    %29 = arith.addf %26, %28 : vector<32x128xf32>
    %cst_27 = arith.constant 0.000000e+00 : f32
    %30 = vector.broadcast %cst_27 : f32 to vector<32x128xf32>
    %31 = arith.maximumf %29, %30 : vector<32x128xf32>
    %32 = vector.shape_cast %31 : vector<32x128xf32> to vector<2x16x128xf32>
    %cst_28 = arith.constant 0.000000e+00 : f32
    %33 = vector.broadcast %cst_28 : f32 to vector<2x1x128xf32>
    %c0_29 = arith.constant 0 : index
    %c7_30 = arith.constant 7 : index
    %c0_31 = arith.constant 0 : index
    %34 = vector.load %arg10[%c0_29, %c7_30, %c0_31] : memref<2x25x128xf32, #tpu.memory_space<vmem>>, vector<2x1x128xf32>
    tpu.vector_store %arg10[%c0_29, %c7_30, %c0_31], %33 {strides = array<i32>} : memref<2x25x128xf32, #tpu.memory_space<vmem>>, vector<2x1x128xf32>,
    %c0_32 = arith.constant 0 : index
    %c24_33 = arith.constant 24 : index
    %c0_34 = arith.constant 0 : index
    %35 = vector.load %arg10[%c0_32, %c24_33, %c0_34] : memref<2x25x128xf32, #tpu.memory_space<vmem>>, vector<2x1x128xf32>
    tpu.vector_store %arg10[%c0_32, %c24_33, %c0_34], %33 {strides = array<i32>} : memref<2x25x128xf32, #tpu.memory_space<vmem>>, vector<2x1x128xf32>,
    %c0_35 = arith.constant 0 : index
    %c8_36 = arith.constant 8 : index
    %c0_37 = arith.constant 0 : index
    %36 = vector.load %arg10[%c0_35, %c8_36, %c0_37] : memref<2x25x128xf32, #tpu.memory_space<vmem>>, vector<2x16x128xf32>
    tpu.vector_store %arg10[%c0_35, %c8_36, %c0_37], %32 {strides = array<i32>} : memref<2x25x128xf32, #tpu.memory_space<vmem>>, vector<2x16x128xf32>,
    %c0_38 = arith.constant 0 : index
    %c7_39 = arith.constant 7 : index
    %c0_40 = arith.constant 0 : index
    %37 = vector.load %arg10[%c0_38, %c7_39, %c0_40] : memref<2x25x128xf32, #tpu.memory_space<vmem>>, vector<2x16x128xf32>
    %38 = vector.shape_cast %37 : vector<2x16x128xf32> to vector<32x128xf32>
    %c0_41 = arith.constant 0 : index
    %c9_42 = arith.constant 9 : index
    %c0_43 = arith.constant 0 : index
    %39 = vector.load %arg10[%c0_41, %c9_42, %c0_43] : memref<2x25x128xf32, #tpu.memory_space<vmem>>, vector<2x16x128xf32>
    %40 = vector.shape_cast %39 : vector<2x16x128xf32> to vector<32x128xf32>
    %41 = vector.shape_cast %32 : vector<2x16x128xf32> to vector<32x128xf32>
    %42 = arith.truncf %41 : vector<32x128xf32> to vector<32x128xbf16>
    %c1_44 = arith.constant 1 : index
    %c0_45 = arith.constant 0 : index
    %c0_46 = arith.constant 0 : index
    %43 = vector.load %arg5[%c1_44, %c0_45, %c0_46] : memref<3x128x128xbf16, #tpu.memory_space<vmem>>, vector<1x128x128xbf16>
    %44 = vector.shape_cast %43 : vector<1x128x128xbf16> to vector<128x128xbf16>
    %cst_47 = arith.constant dense<0.000000e+00> : vector<32x128xf32>
    %45 = tpu.matmul %42, %44, %cst_47 {dimension_numbers = #tpu.dot_dimension_numbers<[1], [0], [0], [1], [0, 0, 1, 1], [], []>} : vector<32x128xbf16>, vector<128x128xbf16>, vector<32x128xf32> -> vector<32x128xf32>
    %46 = arith.truncf %38 : vector<32x128xf32> to vector<32x128xbf16>
    %c0_48 = arith.constant 0 : index
    %c0_49 = arith.constant 0 : index
    %c0_50 = arith.constant 0 : index
    %47 = vector.load %arg5[%c0_48, %c0_49, %c0_50] : memref<3x128x128xbf16, #tpu.memory_space<vmem>>, vector<1x128x128xbf16>
    %48 = vector.shape_cast %47 : vector<1x128x128xbf16> to vector<128x128xbf16>
    %cst_51 = arith.constant dense<0.000000e+00> : vector<32x128xf32>
    %49 = tpu.matmul %46, %48, %cst_51 {dimension_numbers = #tpu.dot_dimension_numbers<[1], [0], [0], [1], [0, 0, 1, 1], [], []>} : vector<32x128xbf16>, vector<128x128xbf16>, vector<32x128xf32> -> vector<32x128xf32>
    %50 = arith.addf %45, %49 : vector<32x128xf32>
    %51 = arith.truncf %40 : vector<32x128xf32> to vector<32x128xbf16>
    %c2_52 = arith.constant 2 : index
    %c0_53 = arith.constant 0 : index
    %c0_54 = arith.constant 0 : index
    %52 = vector.load %arg5[%c2_52, %c0_53, %c0_54] : memref<3x128x128xbf16, #tpu.memory_space<vmem>>, vector<1x128x128xbf16>
    %53 = vector.shape_cast %52 : vector<1x128x128xbf16> to vector<128x128xbf16>
    %cst_55 = arith.constant dense<0.000000e+00> : vector<32x128xf32>
    %54 = tpu.matmul %51, %53, %cst_55 {dimension_numbers = #tpu.dot_dimension_numbers<[1], [0], [0], [1], [0, 0, 1, 1], [], []>} : vector<32x128xbf16>, vector<128x128xbf16>, vector<32x128xf32> -> vector<32x128xf32>
    %55 = arith.addf %50, %54 : vector<32x128xf32>
    %c0_56 = arith.constant 0 : index
    %c0_57 = arith.constant 0 : index
    %56 = vector.load %arg6[%c0_56, %c0_57] : memref<1x128xf32, #tpu.memory_space<vmem>>, vector<1x128xf32>
    %57 = vector.broadcast %56 : vector<1x128xf32> to vector<32x128xf32>
    %58 = arith.mulf %55, %57 : vector<32x128xf32>
    %c0_58 = arith.constant 0 : index
    %c0_59 = arith.constant 0 : index
    %59 = vector.load %arg7[%c0_58, %c0_59] : memref<1x128xf32, #tpu.memory_space<vmem>>, vector<1x128xf32>
    %60 = vector.broadcast %59 : vector<1x128xf32> to vector<32x128xf32>
    %61 = arith.addf %58, %60 : vector<32x128xf32>
    %cst_60 = arith.constant 0.000000e+00 : f32
    %62 = vector.broadcast %cst_60 : f32 to vector<32x128xf32>
    %63 = arith.maximumf %61, %62 : vector<32x128xf32>
    %64 = vector.shape_cast %63 : vector<32x128xf32> to vector<2x16x128xf32>
    %c0_61 = arith.constant 0 : index
    %c0_62 = arith.constant 0 : index
    %c0_63 = arith.constant 0 : index
    %65 = vector.load %arg8[%c0_61, %c0_62, %c0_63] : memref<2x16x128xf32, #tpu.memory_space<vmem>>, vector<2x16x128xf32>
    tpu.vector_store %arg8[%c0_61, %c0_62, %c0_63], %64 {strides = array<i32>} : memref<2x16x128xf32, #tpu.memory_space<vmem>>, vector<2x16x128xf32>,
    return
  }
  func.func @transform_0(%arg0: i32) -> (i32, i32, i32) {
    %c0_i32 = arith.constant 0 : i32
    %c0_i32_0 = arith.constant 0 : i32
    %c0_i32_1 = arith.constant 0 : i32
    return %arg0, %c0_i32, %c0_i32_0 : i32, i32, i32
  }
  func.func @transform_1(%arg0: i32) -> (i32, i32, i32) {
    %c0_i32 = arith.constant 0 : i32
    %c0_i32_0 = arith.constant 0 : i32
    %c0_i32_1 = arith.constant 0 : i32
    %c0_i32_2 = arith.constant 0 : i32
    return %c0_i32, %c0_i32_0, %c0_i32_1 : i32, i32, i32
  }
  func.func @transform_2(%arg0: i32) -> (i32, i32) {
    %c0_i32 = arith.constant 0 : i32
    %c0_i32_0 = arith.constant 0 : i32
    %c0_i32_1 = arith.constant 0 : i32
    return %c0_i32, %c0_i32_0 : i32, i32
  }
  func.func @transform_3(%arg0: i32) -> (i32, i32) {
    %c0_i32 = arith.constant 0 : i32
    %c0_i32_0 = arith.constant 0 : i32
    %c0_i32_1 = arith.constant 0 : i32
    return %c0_i32, %c0_i32_0 : i32, i32
  }
  func.func @transform_4(%arg0: i32) -> (i32, i32, i32) {
    %c0_i32 = arith.constant 0 : i32
    %c0_i32_0 = arith.constant 0 : i32
    %c0_i32_1 = arith.constant 0 : i32
    %c0_i32_2 = arith.constant 0 : i32
    return %c0_i32, %c0_i32_0, %c0_i32_1 : i32, i32, i32
  }
  func.func @transform_5(%arg0: i32) -> (i32, i32) {
    %c0_i32 = arith.constant 0 : i32
    %c0_i32_0 = arith.constant 0 : i32
    %c0_i32_1 = arith.constant 0 : i32
    return %c0_i32, %c0_i32_0 : i32, i32
  }
  func.func @transform_6(%arg0: i32) -> (i32, i32) {
    %c0_i32 = arith.constant 0 : i32
    %c0_i32_0 = arith.constant 0 : i32
    %c0_i32_1 = arith.constant 0 : i32
    return %c0_i32, %c0_i32_0 : i32, i32
  }
  func.func @transform_7(%arg0: i32) -> (i32, i32, i32) {
    %c0_i32 = arith.constant 0 : i32
    %c0_i32_0 = arith.constant 0 : i32
    %c0_i32_1 = arith.constant 0 : i32
    return %arg0, %c0_i32, %c0_i32_0 : i32, i32, i32
  }
}

</mosaic_0001>

<llo_original>
// kernel: tpu_custom_call.1
$region0: #{tpu_custom_call.1}
  #allocation0 [shape = 'u32[]', space=smem, size = 0x4, offset = 0x4, fixed_abs, tag = 'smem constant byte address 0x4 - core index']
  #allocation1 [shape = 'u32[72,128]{1,0:T(1,128)}', space=vmem, size = 0x9000, scoped, tag = 'internal scratch']
  #allocation2 [shape = 'f32[2,25,64]{2,1,0:T(8,128)}', space=vmem, size = 0x8000, scoped, tag = 'scratch operand']
  #allocation3 [shape = 'f32[2,25,128]{2,1,0:T(8,128)}', space=vmem, size = 0x8000, scoped, tag = 'scratch operand']
  %s0 = inlined_call_operand.hbm [shape: f32[2,16,64], index: 0, kind: input, shape index: {}]
  %s1 = inlined_call_operand.hbm [shape: bf16[3,64,128], index: 1, kind: input, shape index: {}]
  %s2 = inlined_call_operand.vmem [shape: f32[1,128], index: 2, kind: input, shape index: {}]
  %s3 = inlined_call_operand.vmem [shape: f32[1,128], index: 3, kind: input, shape index: {}]
  %s4 = inlined_call_operand.hbm [shape: bf16[3,128,128], index: 4, kind: input, shape index: {}]
  %s5 = inlined_call_operand.vmem [shape: f32[1,128], index: 5, kind: input, shape index: {}]
  %s6 = inlined_call_operand.vmem [shape: f32[1,128], index: 6, kind: input, shape index: {}]
  %s7 = inlined_call_operand.hbm [shape: f32[2,16,128], index: 7, kind: output, shape index: {}]
  %s8 = sld [smem:[#allocation0]]
  $region50: #{tpu_custom_call.1} parent=0
    _
  %s10 = ssub.s32 1, %s8
  %s11 = scalar_select 0, %s10, %s8
  $region1: #{tpu_custom_call.1} parent=0
    #allocation4 [shape = 'u8[16384]{0}', space=vmem, size = 0x4000, scoped, tag = 'input window, operand 0, single buffered']
    #allocation5 [shape = 's32[1]{0}', space=sflag, size = 0x4, scoped, tag = 'scoped memory for tpu_custom_call.1']
    #allocation6 [shape = 's32[1]{0}', space=sflag, size = 0x4, scoped, tag = 'scoped memory for tpu_custom_call.1']
    #allocation7 [shape = 'u8[49152]{0}', space=vmem, size = 0xc000, scoped, tag = 'input window, operand 1, single buffered']
    #allocation8 [shape = 's32[1]{0}', space=sflag, size = 0x4, scoped, tag = 'scoped memory for tpu_custom_call.1']
    #allocation9 [shape = 'u8[98304]{0}', space=vmem, size = 0x18000, scoped, tag = 'input window, operand 4, single buffered']
    #allocation10 [shape = 'u8[16384]{0}', space=vmem, size = 0x4000, scoped, tag = 'output window, operand 0, single buffered']
    %12 = vsyncpa [#allocation5], 0
    %13 = vsyncpa [#allocation8], 0
    %14 = vsyncpa [#allocation6], 0
    // Predicated region
    $region2: #{tpu_custom_call.1} parent=1 // pred_check
      _
    $region3: #{tpu_custom_call.1} parent=1 // pred_check_branch
      %16 = sbr.rel (0) target = $region5
    $region4: #{tpu_custom_call.1} parent=1 // pred_region
      %18 = vsyncadd [#allocation5], 0
      %s19 = sshll.u32 %s0, 4
      %s20 = int_to_ptr.hbm [resolvable:$true] %s19
      %s21 = sshll.u32 [#allocation4], 4
      %s22 = int_to_ptr.vmem [resolvable:$true] %s21
      %27 = dma.hbm_to_vmem [thread:$0]  %s20, 512, %s22, [#allocation5], 128, 128, 8
    $region5: #{tpu_custom_call.1} parent=1 // pred_fallthru
      _
    // Predicated region
    $region6: #{tpu_custom_call.1} parent=1 // pred_check
      _
    $region7: #{tpu_custom_call.1} parent=1 // pred_check_branch
      %29 = sbr.rel (0) target = $region9
    $region8: #{tpu_custom_call.1} parent=1 // pred_region
      %31 = vsyncadd [#allocation8], 0
      %s32 = sshll.u32 %s1, 4
      %s33 = int_to_ptr.hbm [resolvable:$true] %s32
      %s34 = sshll.u32 [#allocation7], 4
      %s35 = int_to_ptr.vmem [resolvable:$true] %s34
      %40 = dma.hbm_to_vmem [thread:$0]  %s33, 1536, %s35, [#allocation8], 64, 64, 4
    $region9: #{tpu_custom_call.1} parent=1 // pred_fallthru
      _
    // Predicated region
    $region10: #{tpu_custom_call.1} parent=1 // pred_check
      _
    $region11: #{tpu_custom_call.1} parent=1 // pred_check_branch
      %42 = sbr.rel (0) target = $region13
    $region12: #{tpu_custom_call.1} parent=1 // pred_region
      _
    $region13: #{tpu_custom_call.1} parent=1 // pred_fallthru
      _
    // Predicated region
    $region14: #{tpu_custom_call.1} parent=1 // pred_check
      _
    $region15: #{tpu_custom_call.1} parent=1 // pred_check_branch
      %44 = sbr.rel (0) target = $region17
    $region16: #{tpu_custom_call.1} parent=1 // pred_region
      _
    $region17: #{tpu_custom_call.1} parent=1 // pred_fallthru
      _
    // Predicated region
    $region18: #{tpu_custom_call.1} parent=1 // pred_check
      _
    $region19: #{tpu_custom_call.1} parent=1 // pred_check_branch
      %46 = sbr.rel (0) target = $region21
    $region20: #{tpu_custom_call.1} parent=1 // pred_region
      %48 = vsyncadd [#allocation8], 0
      %s49 = sshll.u32 %s4, 4
      %s50 = int_to_ptr.hbm [resolvable:$true] %s49
      %s51 = sshll.u32 [#allocation9], 4
      %s52 = int_to_ptr.vmem [resolvable:$true] %s51
      %57 = dma.hbm_to_vmem [thread:$0]  %s50, 3072, %s52, [#allocation8], 64, 64, 4
    $region21: #{tpu_custom_call.1} parent=1 // pred_fallthru
      _
    // Predicated region
    $region22: #{tpu_custom_call.1} parent=1 // pred_check
      _
    $region23: #{tpu_custom_call.1} parent=1 // pred_check_branch
      %59 = sbr.rel (0) target = $region25
    $region24: #{tpu_custom_call.1} parent=1 // pred_region
      _
    $region25: #{tpu_custom_call.1} parent=1 // pred_fallthru
      _
    // Predicated region
    $region26: #{tpu_custom_call.1} parent=1 // pred_check
      _
    $region27: #{tpu_custom_call.1} parent=1 // pred_check_branch
      %61 = sbr.rel (0) target = $region29
    $region28: #{tpu_custom_call.1} parent=1 // pred_region
      _
    $region29: #{tpu_custom_call.1} parent=1 // pred_fallthru
      _
    // Predicated region
    $region30: #{tpu_custom_call.1} parent=1 // pred_check
      _
    $region31: #{tpu_custom_call.1} parent=1 // pred_check_branch
      %63 = sbr.rel (0) target = $region33
    $region32: #{tpu_custom_call.1} parent=1 // pred_region
      %65 = dma.done [#allocation5], 512
    $region33: #{tpu_custom_call.1} parent=1 // pred_fallthru
      _
    // Predicated region
    $region34: #{tpu_custom_call.1} parent=1 // pred_check
      _
    $region35: #{tpu_custom_call.1} parent=1 // pred_check_branch
      %67 = sbr.rel (0) target = $region37
    $region36: #{tpu_custom_call.1} parent=1 // pred_region
      %69 = dma.done [#allocation8], 1536
    $region37: #{tpu_custom_call.1} parent=1 // pred_fallthru
      _
    // Predicated region
    $region38: #{tpu_custom_call.1} parent=1 // pred_check
      _
    $region39: #{tpu_custom_call.1} parent=1 // pred_check_branch
      %71 = sbr.rel (0) target = $region41
    $region40: #{tpu_custom_call.1} parent=1 // pred_region
      %73 = dma.done [#allocation8], 3072
    $region41: #{tpu_custom_call.1} parent=1 // pred_fallthru
      _
    %v75 = vld [vmem:[#allocation4] sm:$0xff]
    %v76 = vld [vmem:[#allocation4 + $0x8] sm:$0xff]
    %v77 = vld [vmem:[#allocation4 + $0x10] sm:$0xff]
    %v78 = vld [vmem:[#allocation4 + $0x18] sm:$0xff]
    %vm79 = vcmask 516096
    %80 = vst.msk [vmem:[#allocation2 + $0x7] sm:$0x1] %vm79, 0.0
    %81 = vst.msk [vmem:[#allocation2 + $0x27] sm:$0x1] %vm79, 0.0
    %82 = vst.msk [vmem:[#allocation2 + $0x18] sm:$0x1] %vm79, 0.0
    %83 = vst.msk [vmem:[#allocation2 + $0x38] sm:$0x1] %vm79, 0.0
    %vm84 = vcmask 523264
    %85 = vst.msk [vmem:[#allocation2 + $0x8] sm:$0xff] %vm84, %v75
    %86 = vst.msk [vmem:[#allocation2 + $0x10] sm:$0xff] %vm84, %v76
    %87 = vst.msk [vmem:[#allocation2 + $0x28] sm:$0xff] %vm84, %v77
    %88 = vst.msk [vmem:[#allocation2 + $0x30] sm:$0xff] %vm84, %v78
    %v89 = vld [vmem:[#allocation2 + $0x7] sm:$0xff]
    %v90 = vld [vmem:[#allocation2 + $0xf] sm:$0xff]
    %v91 = vld [vmem:[#allocation2 + $0x27] sm:$0xff]
    %v92 = vld [vmem:[#allocation2 + $0x2f] sm:$0xff]
    %v93 = vld [vmem:[#allocation2 + $0x9] sm:$0xff]
    %v94 = vld [vmem:[#allocation2 + $0x11] sm:$0xff]
    %v95 = vld [vmem:[#allocation2 + $0x29] sm:$0xff]
    %v96 = vld [vmem:[#allocation2 + $0x31] sm:$0xff]
    %v97 = vpack.c.bf16 %v76, %v75
    %v98 = vpack.c.bf16 %v78, %v77
    %s99 = scalar_lea.vmem [#allocation7], 32
    %v100 = vld [vmem:[%s99] sm:$0xf]
    %v101 = vld [vmem:[%s99 + $0x4] sm:$0xf]
    %v102 = vld [vmem:[%s99 + $0x8] sm:$0xf]
    %v103 = vld [vmem:[%s99 + $0xc] sm:$0xf]
    %v104 = vld [vmem:[%s99 + $0x10] sm:$0xf]
    %v105 = vld [vmem:[%s99 + $0x14] sm:$0xf]
    %v106 = vld [vmem:[%s99 + $0x18] sm:$0xf]
    %v107 = vld [vmem:[%s99 + $0x1c] sm:$0xf]
    %v108 = vpack.c.bf16 %v90, %v89
    %v109 = vpack.c.bf16 %v92, %v91
    %v110 = vld [vmem:[#allocation7] sm:$0xf]
    %v111 = vld [vmem:[#allocation7 + $0x4] sm:$0xf]
    %v112 = vld [vmem:[#allocation7 + $0x8] sm:$0xf]
    %v113 = vld [vmem:[#allocation7 + $0xc] sm:$0xf]
    %v114 = vld [vmem:[#allocation7 + $0x10] sm:$0xf]
    %v115 = vld [vmem:[#allocation7 + $0x14] sm:$0xf]
    %v116 = vld [vmem:[#allocation7 + $0x18] sm:$0xf]
    %v117 = vld [vmem:[#allocation7 + $0x1c] sm:$0xf]
    %v126 = vunpack.c.l.b16 %v110
    %v127 = vunpack.c.l.b16 %v111
    %v128 = vunpack.c.l.b16 %v112
    %v129 = vunpack.c.l.b16 %v113
    %v130 = vunpack.c.l.b16 %v114
    %v131 = vunpack.c.l.b16 %v115
    %v132 = vunpack.c.l.b16 %v116
    %v133 = vunpack.c.l.b16 %v117
    %v134 = vpack.c.b16 %v127, %v126
    %v135 = vpack.c.b16 %v129, %v128
    %v136 = vpack.c.b16 %v131, %v130
    %v137 = vpack.c.b16 %v133, %v132
    %v143 = vsel %vm84, %v108, 0
    %v146 = vsel %vm84, %v109, 0
    %148 = vmatpush.bf16.msra.mxu0 0
    %149 = vmatpush.bf16.msra.mxu0 0
    %150 = vmatpush.bf16.msra.mxu0 0
    %151 = vmatpush.bf16.msra.mxu0 0
    %152 = vmatpush.bf16.msra.mxu0 %v137
    %153 = vmatpush.bf16.msra.mxu0 %v136
    %154 = vmatpush.bf16.msra.mxu0 %v135
    %155 = vmatpush.bf16.msra.mxu0 %v134
    %156 = vmatmul.bf16.gmra.mxu0 %v143
    %v157 = vpop.f32.mrf.mxu0
    %v158 = vadd.f32 0.0, %v157
    %v159 = vpop.f32.mrf.mxu0
    %v160 = vadd.f32 0.0, %v159
    %161 = vmatmul.bf16.gmra.mxu0 %v146
    %v162 = vpop.f32.mrf.mxu0
    %v163 = vadd.f32 0.0, %v162
    %v164 = vpop.f32.mrf.mxu0
    %v165 = vadd.f32 0.0, %v164
    %166 = vdwg.mxu0
    %v175 = vunpack.c.l.b16 %v100
    %v176 = vunpack.c.l.b16 %v101
    %v177 = vunpack.c.l.b16 %v102
    %v178 = vunpack.c.l.b16 %v103
    %v179 = vunpack.c.l.b16 %v104
    %v180 = vunpack.c.l.b16 %v105
    %v181 = vunpack.c.l.b16 %v106
    %v182 = vunpack.c.l.b16 %v107
    %v183 = vpack.c.b16 %v176, %v175
    %v184 = vpack.c.b16 %v178, %v177
    %v185 = vpack.c.b16 %v180, %v179
    %v186 = vpack.c.b16 %v182, %v181
    %v192 = vsel %vm84, %v97, 0
    %v195 = vsel %vm84, %v98, 0
    %197 = vmatpush.bf16.msra.mxu0 0
    %198 = vmatpush.bf16.msra.mxu0 0
    %199 = vmatpush.bf16.msra.mxu0 0
    %200 = vmatpush.bf16.msra.mxu0 0
    %201 = vmatpush.bf16.msra.mxu0 %v186
    %202 = vmatpush.bf16.msra.mxu0 %v185
    %203 = vmatpush.bf16.msra.mxu0 %v184
    %204 = vmatpush.bf16.msra.mxu0 %v183
    %205 = vmatmul.bf16.gmra.mxu0 %v192
    %v206 = vpop.f32.mrf.mxu0
    %v207 = vadd.f32 %v158, %v206
    %v208 = vpop.f32.mrf.mxu0
    %v209 = vadd.f32 %v160, %v208
    %210 = vmatmul.bf16.gmra.mxu0 %v195
    %v211 = vpop.f32.mrf.mxu0
    %v212 = vadd.f32 %v163, %v211
    %v213 = vpop.f32.mrf.mxu0
    %v214 = vadd.f32 %v165, %v213
    %215 = vdwg.mxu0
    %v216 = vpack.c.bf16 %v94, %v93
    %v217 = vpack.c.bf16 %v96, %v95
    %s218 = scalar_lea.vmem [#allocation7], 64
    %v219 = vld [vmem:[%s218] sm:$0xf]
    %v220 = vld [vmem:[%s218 + $0x4] sm:$0xf]
    %v221 = vld [vmem:[%s218 + $0x8] sm:$0xf]
    %v222 = vld [vmem:[%s218 + $0xc] sm:$0xf]
    %v223 = vld [vmem:[%s218 + $0x10] sm:$0xf]
    %v224 = vld [vmem:[%s218 + $0x14] sm:$0xf]
    %v225 = vld [vmem:[%s218 + $0x18] sm:$0xf]
    %v226 = vld [vmem:[%s218 + $0x1c] sm:$0xf]
    %v235 = vunpack.c.l.b16 %v219
    %v236 = vunpack.c.l.b16 %v220
    %v237 = vunpack.c.l.b16 %v221
    %v238 = vunpack.c.l.b16 %v222
    %v239 = vunpack.c.l.b16 %v223
    %v240 = vunpack.c.l.b16 %v224
    %v241 = vunpack.c.l.b16 %v225
    %v242 = vunpack.c.l.b16 %v226
    %v243 = vpack.c.b16 %v236, %v235
    %v244 = vpack.c.b16 %v238, %v237
    %v245 = vpack.c.b16 %v240, %v239
    %v246 = vpack.c.b16 %v242, %v241
    %v252 = vsel %vm84, %v216, 0
    %v255 = vsel %vm84, %v217, 0
    %257 = vmatpush.bf16.msra.mxu0 0
    %258 = vmatpush.bf16.msra.mxu0 0
    %259 = vmatpush.bf16.msra.mxu0 0
    %260 = vmatpush.bf16.msra.mxu0 0
    %261 = vmatpush.bf16.msra.mxu0 %v246
    %262 = vmatpush.bf16.msra.mxu0 %v245
    %263 = vmatpush.bf16.msra.mxu0 %v244
    %264 = vmatpush.bf16.msra.mxu0 %v243
    %265 = vmatmul.bf16.gmra.mxu0 %v252
    %v266 = vpop.f32.mrf.mxu0
    %v267 = vadd.f32 0.0, %v266
    %v268 = vpop.f32.mrf.mxu0
    %v269 = vadd.f32 0.0, %v268
    %270 = vmatmul.bf16.gmra.mxu0 %v255
    %v271 = vpop.f32.mrf.mxu0
    %v272 = vadd.f32 0.0, %v271
    %v273 = vpop.f32.mrf.mxu0
    %v274 = vadd.f32 0.0, %v273
    %275 = vdwg.mxu0
    %v276 = vadd.f32 %v207, %v267
    %v277 = vadd.f32 %v209, %v269
    %v278 = vadd.f32 %v212, %v272
    %v279 = vadd.f32 %v214, %v274
    %v280 = vld [vmem:[%s2] sm:$0x1]
    %v282 = vperm.slane %v280, 0
    %v284 = vmul.f32 %v276, %v282
    %v285 = vmul.f32 %v277, %v282
    %v286 = vmul.f32 %v278, %v282
    %v287 = vmul.f32 %v279, %v282
    %v288 = vld [vmem:[%s3] sm:$0x1]
    %v290 = vperm.slane %v288, 0
    %v292 = vadd.f32 %v284, %v290
    %v293 = vadd.f32 %v285, %v290
    %v294 = vadd.f32 %v286, %v290
    %v295 = vadd.f32 %v287, %v290
    %v296 = vmax.f32 %v292, 0.0
    %v297 = vmax.f32 %v293, 0.0
    %v298 = vmax.f32 %v294, 0.0
    %v299 = vmax.f32 %v295, 0.0
    %300 = vst [vmem:[#allocation3 + $0x7] sm:$0x1] 0.0
    %301 = vst [vmem:[#allocation3 + $0x27] sm:$0x1] 0.0
    %302 = vst [vmem:[#allocation3 + $0x18] sm:$0x1] 0.0
    %303 = vst [vmem:[#allocation3 + $0x38] sm:$0x1] 0.0
    %304 = vst [vmem:[#allocation3 + $0x8] sm:$0xff] %v296
    %305 = vst [vmem:[#allocation3 + $0x10] sm:$0xff] %v297
    %306 = vst [vmem:[#allocation3 + $0x28] sm:$0xff] %v298
    %307 = vst [vmem:[#allocation3 + $0x30] sm:$0xff] %v299
    %v308 = vld [vmem:[#allocation3 + $0x7] sm:$0xff]
    %v309 = vld [vmem:[#allocation3 + $0xf] sm:$0xff]
    %v310 = vld [vmem:[#allocation3 + $0x27] sm:$0xff]
    %v311 = vld [vmem:[#allocation3 + $0x2f] sm:$0xff]
    %v312 = vld [vmem:[#allocation3 + $0x9] sm:$0xff]
    %v313 = vld [vmem:[#allocation3 + $0x11] sm:$0xff]
    %v314 = vld [vmem:[#allocation3 + $0x29] sm:$0xff]
    %v315 = vld [vmem:[#allocation3 + $0x31] sm:$0xff]
    %v316 = vpack.c.bf16 %v297, %v296
    %v317 = vpack.c.bf16 %v299, %v298
    %s318 = scalar_lea.vmem [#allocation9], 64
    %v319 = vld [vmem:[%s318] sm:$0xf]
    %v320 = vld [vmem:[%s318 + $0x4] sm:$0xf]
    %v321 = vld [vmem:[%s318 + $0x8] sm:$0xf]
    %v322 = vld [vmem:[%s318 + $0xc] sm:$0xf]
    %v323 = vld [vmem:[%s318 + $0x10] sm:$0xf]
    %v324 = vld [vmem:[%s318 + $0x14] sm:$0xf]
    %v325 = vld [vmem:[%s318 + $0x18] sm:$0xf]
    %v326 = vld [vmem:[%s318 + $0x1c] sm:$0xf]
    %v327 = vld [vmem:[%s318 + $0x20] sm:$0xf]
    %v328 = vld [vmem:[%s318 + $0x24] sm:$0xf]
    %v329 = vld [vmem:[%s318 + $0x28] sm:$0xf]
    %v330 = vld [vmem:[%s318 + $0x2c] sm:$0xf]
    %v331 = vld [vmem:[%s318 + $0x30] sm:$0xf]
    %v332 = vld [vmem:[%s318 + $0x34] sm:$0xf]
    %v333 = vld [vmem:[%s318 + $0x38] sm:$0xf]
    %v334 = vld [vmem:[%s318 + $0x3c] sm:$0xf]
    %v335 = vpack.c.bf16 %v309, %v308
    %v336 = vpack.c.bf16 %v311, %v310
    %v337 = vld [vmem:[#allocation9] sm:$0xf]
    %v338 = vld [vmem:[#allocation9 + $0x4] sm:$0xf]
    %v339 = vld [vmem:[#allocation9 + $0x8] sm:$0xf]
    %v340 = vld [vmem:[#allocation9 + $0xc] sm:$0xf]
    %v341 = vld [vmem:[#allocation9 + $0x10] sm:$0xf]
    %v342 = vld [vmem:[#allocation9 + $0x14] sm:$0xf]
    %v343 = vld [vmem:[#allocation9 + $0x18] sm:$0xf]
    %v344 = vld [vmem:[#allocation9 + $0x1c] sm:$0xf]
    %v345 = vld [vmem:[#allocation9 + $0x20] sm:$0xf]
    %v346 = vld [vmem:[#allocation9 + $0x24] sm:$0xf]
    %v347 = vld [vmem:[#allocation9 + $0x28] sm:$0xf]
    %v348 = vld [vmem:[#allocation9 + $0x2c] sm:$0xf]
    %v349 = vld [vmem:[#allocation9 + $0x30] sm:$0xf]
    %v350 = vld [vmem:[#allocation9 + $0x34] sm:$0xf]
    %v351 = vld [vmem:[#allocation9 + $0x38] sm:$0xf]
    %v352 = vld [vmem:[#allocation9 + $0x3c] sm:$0xf]
    %v369 = vunpack.c.l.b16 %v337
    %v370 = vunpack.c.l.b16 %v338
    %v371 = vunpack.c.l.b16 %v339
    %v372 = vunpack.c.l.b16 %v340
    %v373 = vunpack.c.l.b16 %v341
    %v374 = vunpack.c.l.b16 %v342
    %v375 = vunpack.c.l.b16 %v343
    %v376 = vunpack.c.l.b16 %v344
    %v377 = vunpack.c.l.b16 %v345
    %v378 = vunpack.c.l.b16 %v346
    %v379 = vunpack.c.l.b16 %v347
    %v380 = vunpack.c.l.b16 %v348
    %v381 = vunpack.c.l.b16 %v349
    %v382 = vunpack.c.l.b16 %v350
    %v383 = vunpack.c.l.b16 %v351
    %v384 = vunpack.c.l.b16 %v352
    %v385 = vpack.c.b16 %v370, %v369
    %v386 = vpack.c.b16 %v372, %v371
    %v387 = vpack.c.b16 %v374, %v373
    %v388 = vpack.c.b16 %v376, %v375
    %v389 = vpack.c.b16 %v378, %v377
    %v390 = vpack.c.b16 %v380, %v379
    %v391 = vpack.c.b16 %v382, %v381
    %v392 = vpack.c.b16 %v384, %v383
    %401 = vmatpush.bf16.msra.mxu0 %v392
    %402 = vmatpush.bf16.msra.mxu0 %v391
    %403 = vmatpush.bf16.msra.mxu0 %v390
    %404 = vmatpush.bf16.msra.mxu0 %v389
    %405 = vmatpush.bf16.msra.mxu0 %v388
    %406 = vmatpush.bf16.msra.mxu0 %v387
    %407 = vmatpush.bf16.msra.mxu0 %v386
    %408 = vmatpush.bf16.msra.mxu0 %v385
    %409 = vmatmul.bf16.gmra.mxu0 %v335
    %v410 = vpop.f32.mrf.mxu0
    %v411 = vadd.f32 0.0, %v410
    %v412 = vpop.f32.mrf.mxu0
    %v413 = vadd.f32 0.0, %v412
    %414 = vmatmul.bf16.gmra.mxu0 %v336
    %v415 = vpop.f32.mrf.mxu0
    %v416 = vadd.f32 0.0, %v415
    %v417 = vpop.f32.mrf.mxu0
    %v418 = vadd.f32 0.0, %v417
    %419 = vdwg.mxu0
    %v436 = vunpack.c.l.b16 %v319
    %v437 = vunpack.c.l.b16 %v320
    %v438 = vunpack.c.l.b16 %v321
    %v439 = vunpack.c.l.b16 %v322
    %v440 = vunpack.c.l.b16 %v323
    %v441 = vunpack.c.l.b16 %v324
    %v442 = vunpack.c.l.b16 %v325
    %v443 = vunpack.c.l.b16 %v326
    %v444 = vunpack.c.l.b16 %v327
    %v445 = vunpack.c.l.b16 %v328
    %v446 = vunpack.c.l.b16 %v329
    %v447 = vunpack.c.l.b16 %v330
    %v448 = vunpack.c.l.b16 %v331
    %v449 = vunpack.c.l.b16 %v332
    %v450 = vunpack.c.l.b16 %v333
    %v451 = vunpack.c.l.b16 %v334
    %v452 = vpack.c.b16 %v437, %v436
    %v453 = vpack.c.b16 %v439, %v438
    %v454 = vpack.c.b16 %v441, %v440
    %v455 = vpack.c.b16 %v443, %v442
    %v456 = vpack.c.b16 %v445, %v444
    %v457 = vpack.c.b16 %v447, %v446
    %v458 = vpack.c.b16 %v449, %v448
    %v459 = vpack.c.b16 %v451, %v450
    %468 = vmatpush.bf16.msra.mxu0 %v459
    %469 = vmatpush.bf16.msra.mxu0 %v458
    %470 = vmatpush.bf16.msra.mxu0 %v457
    %471 = vmatpush.bf16.msra.mxu0 %v456
    %472 = vmatpush.bf16.msra.mxu0 %v455
    %473 = vmatpush.bf16.msra.mxu0 %v454
    %474 = vmatpush.bf16.msra.mxu0 %v453
    %475 = vmatpush.bf16.msra.mxu0 %v452
    %476 = vmatmul.bf16.gmra.mxu0 %v316
    %v477 = vpop.f32.mrf.mxu0
    %v478 = vadd.f32 %v411, %v477
    %v479 = vpop.f32.mrf.mxu0
    %v480 = vadd.f32 %v413, %v479
    %481 = vmatmul.bf16.gmra.mxu0 %v317
    %v482 = vpop.f32.mrf.mxu0
    %v483 = vadd.f32 %v416, %v482
    %v484 = vpop.f32.mrf.mxu0
    %v485 = vadd.f32 %v418, %v484
    %486 = vdwg.mxu0
    %v487 = vpack.c.bf16 %v313, %v312
    %v488 = vpack.c.bf16 %v315, %v314
    %s489 = scalar_lea.vmem [#allocation9], 128
    %v490 = vld [vmem:[%s489] sm:$0xf]
    %v491 = vld [vmem:[%s489 + $0x4] sm:$0xf]
    %v492 = vld [vmem:[%s489 + $0x8] sm:$0xf]
    %v493 = vld [vmem:[%s489 + $0xc] sm:$0xf]
    %v494 = vld [vmem:[%s489 + $0x10] sm:$0xf]
    %v495 = vld [vmem:[%s489 + $0x14] sm:$0xf]
    %v496 = vld [vmem:[%s489 + $0x18] sm:$0xf]
    %v497 = vld [vmem:[%s489 + $0x1c] sm:$0xf]
    %v498 = vld [vmem:[%s489 + $0x20] sm:$0xf]
    %v499 = vld [vmem:[%s489 + $0x24] sm:$0xf]
    %v500 = vld [vmem:[%s489 + $0x28] sm:$0xf]
    %v501 = vld [vmem:[%s489 + $0x2c] sm:$0xf]
    %v502 = vld [vmem:[%s489 + $0x30] sm:$0xf]
    %v503 = vld [vmem:[%s489 + $0x34] sm:$0xf]
    %v504 = vld [vmem:[%s489 + $0x38] sm:$0xf]
    %v505 = vld [vmem:[%s489 + $0x3c] sm:$0xf]
    %v522 = vunpack.c.l.b16 %v490
    %v523 = vunpack.c.l.b16 %v491
    %v524 = vunpack.c.l.b16 %v492
    %v525 = vunpack.c.l.b16 %v493
    %v526 = vunpack.c.l.b16 %v494
    %v527 = vunpack.c.l.b16 %v495
    %v528 = vunpack.c.l.b16 %v496
    %v529 = vunpack.c.l.b16 %v497
    %v530 = vunpack.c.l.b16 %v498
    %v531 = vunpack.c.l.b16 %v499
    %v532 = vunpack.c.l.b16 %v500
    %v533 = vunpack.c.l.b16 %v501
    %v534 = vunpack.c.l.b16 %v502
    %v535 = vunpack.c.l.b16 %v503
    %v536 = vunpack.c.l.b16 %v504
    %v537 = vunpack.c.l.b16 %v505
    %v538 = vpack.c.b16 %v523, %v522
    %v539 = vpack.c.b16 %v525, %v524
    %v540 = vpack.c.b16 %v527, %v526
    %v541 = vpack.c.b16 %v529, %v528
    %v542 = vpack.c.b16 %v531, %v530
    %v543 = vpack.c.b16 %v533, %v532
    %v544 = vpack.c.b16 %v535, %v534
    %v545 = vpack.c.b16 %v537, %v536
    %554 = vmatpush.bf16.msra.mxu0 %v545
    %555 = vmatpush.bf16.msra.mxu0 %v544
    %556 = vmatpush.bf16.msra.mxu0 %v543
    %557 = vmatpush.bf16.msra.mxu0 %v542
    %558 = vmatpush.bf16.msra.mxu0 %v541
    %559 = vmatpush.bf16.msra.mxu0 %v540
    %560 = vmatpush.bf16.msra.mxu0 %v539
    %561 = vmatpush.bf16.msra.mxu0 %v538
    %562 = vmatmul.bf16.gmra.mxu0 %v487
    %v563 = vpop.f32.mrf.mxu0
    %v564 = vadd.f32 0.0, %v563
    %v565 = vpop.f32.mrf.mxu0
    %v566 = vadd.f32 0.0, %v565
    %567 = vmatmul.bf16.gmra.mxu0 %v488
    %v568 = vpop.f32.mrf.mxu0
    %v569 = vadd.f32 0.0, %v568
    %v570 = vpop.f32.mrf.mxu0
    %v571 = vadd.f32 0.0, %v570
    %572 = vdwg.mxu0
    %v573 = vadd.f32 %v478, %v564
    %v574 = vadd.f32 %v480, %v566
    %v575 = vadd.f32 %v483, %v569
    %v576 = vadd.f32 %v485, %v571
    %v577 = vld [vmem:[%s5] sm:$0x1]
    %v579 = vperm.slane %v577, 0
    %v581 = vmul.f32 %v573, %v579
    %v582 = vmul.f32 %v574, %v579
    %v583 = vmul.f32 %v575, %v579
    %v584 = vmul.f32 %v576, %v579
    %v585 = vld [vmem:[%s6] sm:$0x1]
    %v587 = vperm.slane %v585, 0
    %v589 = vadd.f32 %v581, %v587
    %v590 = vadd.f32 %v582, %v587
    %v591 = vadd.f32 %v583, %v587
    %v592 = vadd.f32 %v584, %v587
    %v593 = vmax.f32 %v589, 0.0
    %v594 = vmax.f32 %v590, 0.0
    %v595 = vmax.f32 %v591, 0.0
    %v596 = vmax.f32 %v592, 0.0
    %597 = vst [vmem:[#allocation10] sm:$0xff] %v593
    %598 = vst [vmem:[#allocation10 + $0x8] sm:$0xff] %v594
    %599 = vst [vmem:[#allocation10 + $0x10] sm:$0xff] %v595
    %600 = vst [vmem:[#allocation10 + $0x18] sm:$0xff] %v596
    // Predicated region
    $region42: #{tpu_custom_call.1} parent=1 // pred_check
      _
    $region43: #{tpu_custom_call.1} parent=1 // pred_check_branch
      %602 = sbr.rel (0) target = $region45
    $region44: #{tpu_custom_call.1} parent=1 // pred_region
      %604 = vsyncadd [#allocation6], 0
      %s605 = sshll.u32 [#allocation10], 4
      %s606 = int_to_ptr.vmem [resolvable:$true] %s605
      %s607 = sshll.u32 %s7, 4
      %s608 = int_to_ptr.hbm [resolvable:$true] %s607
      %613 = dma.vmem_to_hbm [thread:$0]  %s606, 512, %s608, [#allocation6], 128, 128, 8
    $region45: #{tpu_custom_call.1} parent=1 // pred_fallthru
      _
    // Predicated region
    $region46: #{tpu_custom_call.1} parent=1 // pred_check
      _
    $region47: #{tpu_custom_call.1} parent=1 // pred_check_branch
      %615 = sbr.rel (0) target = $region49
    $region48: #{tpu_custom_call.1} parent=1 // pred_region
      %617 = dma.done [#allocation6], 512
    $region49: #{tpu_custom_call.1} parent=1 // pred_fallthru
      _
    %618 = vsyncpa [#allocation5], 1
    %619 = vsyncpa [#allocation8], 1
    %620 = vsyncpa [#allocation6], 1

</llo_original>
